<compile_context>
chip_gen: v7x
topology: tpu7x:2x2x1
jax: 0.10.0
libtpu: 0.0.40
codegen_flags: <defaults>
</compile_context>

<pallas_src>
import jax
import jax.numpy as jnp
from jax import lax
from jax.experimental import pallas as pl
from jax.experimental.pallas import tpu as pltpu


# ----------------------------------------------------------------------------
# dmconfig equivalent
# ----------------------------------------------------------------------------
class DMConfig:
    num_feat = 32
    num_classes = 10
    num_channels = 1
    input_dim = (16, 16)
    beta_1 = 1e-4
    beta_T = 0.02
    T = 50
    mask_p = 0.1


# ----------------------------------------------------------------------------
# Pallas kernel: one batch block per grid step, chunked feature loop inside
# ----------------------------------------------------------------------------
def ddpm_forward_kernel(x0_ref, eps_ref, side_ref, xw_ref, ow_ref, ob_ref,
                        eps_theta_ref, sse_ref):
    """Per batch block:
         x0_ref, eps_ref : (Bt, P)     VMEM  flattened images / noise
         side_ref        : (Bt, F+2)   VMEM  [emb | sqrt(a_bar) | sqrt(1-a_bar)]
         xw_ref, ow_ref  : (F,)        SMEM  hidden in/out weights (scalars)
         ob_ref          : (1,)        SMEM  output bias
         eps_theta_ref   : (Bt, P)     VMEM  predicted noise
         sse_ref         : (Bt, 1)     VMEM  per-sample sum of squared error
    """
    bt, _ = x0_ref.shape
    nfeat = side_ref.shape[1] - 2                 # static
    chunk = 16 if bt % 16 == 0 else 8             # register-sized row chunk
    n_chunks = bt // chunk
    ob = ob_ref[0]

    def body(c, carry):
        r = pl.multiple_of(c * chunk, chunk)
        rows = pl.ds(r, chunk)

        x0 = x0_ref[rows, :]                      # (chunk, P)  in vregs
        eps = eps_ref[rows, :]                    # (chunk, P)
        side = side_ref[rows, :]                  # (chunk, F+2)

        sa = side[:, nfeat:nfeat + 1]             # (chunk, 1)
        sb = side[:, nfeat + 1:nfeat + 2]         # (chunk, 1)
        # forward diffusion q(x_t | x_0): per-sample scales lane-broadcast
        x_t = x0 * sa + eps * sb                  # (chunk, P)

        # Pointwise conditional network; tiny hidden width statically
        # unrolled on the VPU, everything register-resident.
        acc = jnp.zeros_like(x_t)
        for f in range(nfeat):
            h = jnp.maximum(xw_ref[f] * x_t + side[:, f:f + 1], 0.0)
            acc = acc + ow_ref[f] * h
        eps_theta = acc + ob
        eps_theta_ref[rows, :] = eps_theta        # lane-dense store

        # per-sample squared-error partial while chunk is still in registers
        diff = eps_theta - eps
        sse_ref[rows, :] = jnp.sum(diff * diff, axis=1, keepdims=True)
        return carry

    lax.fori_loop(0, n_chunks, body, 0)


# ----------------------------------------------------------------------------
# Glue: params, scheduler tables, wrapper
# ----------------------------------------------------------------------------
def init_params(cfg, key):
    F, NC = cfg.num_feat, cfg.num_classes
    ks = jax.random.split(key, 5)
    xw = jax.random.normal(ks[0], (F, 1), jnp.float32) * 0.5
    tw = jax.random.normal(ks[1], (F, 1), jnp.float32) * 0.5
    tb = jax.random.normal(ks[2], (F, 1), jnp.float32) * 0.1
    cw = jax.random.normal(ks[3], (F, NC), jnp.float32) * 0.5
    ow = jax.random.normal(ks[4], (1, F), jnp.float32) * (1.0 / F ** 0.5)
    ob = jnp.zeros((1, 1), jnp.float32)
    return (xw, tw, tb, cw, ow, ob)


def scheduler_tables(cfg):
    beta = jnp.linspace(cfg.beta_1, cfg.beta_T, cfg.T)
    alpha = 1.0 - beta
    alpha_bar = jnp.cumprod(alpha)
    return jnp.sqrt(alpha_bar), jnp.sqrt(1.0 - alpha_bar)


def _round_up(x, m):
    return ((x + m - 1) // m) * m


def conditional_ddpm_forward(params, cfg, images, conditions, key):
    """Mirrors ConditionalDDPM.forward. Returns (noise_loss, eps_theta, eps)."""
    B = conditions.shape[0]
    H, W = cfg.input_dim
    P = H * W
    NC = cfg.num_classes
    F_ = cfg.num_feat

    k_mask, k_t, k_eps = jax.random.split(key, 3)

    # conditioning with classifier-free-guidance masking (matches the torch
    # code: keep label iff uniform > mask_p, else all -1)
    one_hot = jax.nn.one_hot(conditions, NC, dtype=jnp.float32)
    mask_p = (jax.random.uniform(k_mask, (B,)) > cfg.mask_p).astype(jnp.float32)
    one_hot = one_hot * mask_p[:, None] - (1.0 - mask_p[:, None])

    # timestep and noise sampling
    t_s = jax.random.randint(k_t, (B,), 1, cfg.T + 1)
    epsilon = jax.random.normal(k_eps, images.shape, dtype=jnp.float32)

    # scheduler gathers + embedding precompute (O(B*F) -> stays in the wrapper)
    sqrt_ab, sqrt_om_ab = scheduler_tables(cfg)
    sa = sqrt_ab[t_s - 1]                                        # (B,)
    sb = sqrt_om_ab[t_s - 1]                                     # (B,)
    tn = t_s.astype(jnp.float32) / cfg.T                         # (B,)

    xw, tw, tb, cw, ow, ob = params
    c_emb = one_hot @ cw.T                                       # (B, F)
    t_emb = tn[:, None] * tw[:, 0][None, :] + tb[:, 0][None, :]  # (B, F)
    emb = c_emb + t_emb                                          # (B, F)

    # merged lane-resident side block: [emb | sqrt(a_bar) | sqrt(1-a_bar)]
    side = jnp.concatenate([emb, sa[:, None], sb[:, None]], axis=1)  # (B, F+2)

    # ----- batch blocking -----------------------------------------------
    # Large blocks amortize the ~0.35 us per-step pipeline cost; >= 2 blocks
    # whenever possible so v7x's two TensorCores both get work.  Per-block
    # working set (double-buffered) stays ~8.2 KiB * bt, far under the
    # default scoped VMEM on all of v5e/v6e/v7x at bt <= 512.
    bt_cap = 512
    if B <= 8:
        b_pad = 8
        bt = 8
    else:
        b_pad = _round_up(B, 16)
        if b_pad // 2 <= bt_cap:
            bt = b_pad // 2                      # 2 blocks, multiple of 8
        else:
            bt = bt_cap
            b_pad = _round_up(B, bt)
    grid = (b_pad // bt,)

    def pad_b(a):
        if b_pad == B:
            return a                             # no extra HBM copy
        pad = [(0, b_pad - B)] + [(0, 0)] * (a.ndim - 1)
        return jnp.pad(a, pad)

    img_flat = pad_b(images.reshape(B, P).astype(jnp.float32))   # (B_pad, P)
    eps_flat = pad_b(epsilon.reshape(B, P))                      # (B_pad, P)
    side_pad = pad_b(side)                                       # (B_pad, F+2)
    xw_s = xw[:, 0]                                              # (F,)  SMEM
    ow_s = ow[0, :]                                              # (F,)  SMEM
    ob_s = ob.reshape(1)                                         # (1,)  SMEM

    cost = pl.CostEstimate(
        flops=int(167 * b_pad * P),
        transcendentals=0,
        bytes_accessed=int(4 * b_pad * (3 * P + F_ + 3)),
    )

    eps_theta_flat, sse = pl.pallas_call(
        ddpm_forward_kernel,
        out_shape=(jax.ShapeDtypeStruct((b_pad, P), jnp.float32),
                   jax.ShapeDtypeStruct((b_pad, 1), jnp.float32)),
        grid_spec=pltpu.PrefetchScalarGridSpec(
            num_scalar_prefetch=0,
            grid=grid,
            in_specs=[
                pl.BlockSpec((bt, P), lambda i: (i, 0)),            # images
                pl.BlockSpec((bt, P), lambda i: (i, 0)),            # epsilon
                pl.BlockSpec((bt, F_ + 2), lambda i: (i, 0)),       # side
                pl.BlockSpec(memory_space=pltpu.MemorySpace.SMEM),  # xw
                pl.BlockSpec(memory_space=pltpu.MemorySpace.SMEM),  # ow
                pl.BlockSpec(memory_space=pltpu.MemorySpace.SMEM),  # ob
            ],
            out_specs=(
                pl.BlockSpec((bt, P), lambda i: (i, 0)),            # eps_theta
                pl.BlockSpec((bt, 1), lambda i: (i, 0)),            # per-sample SSE
            ),
        ),
        compiler_params=pltpu.CompilerParams(
            dimension_semantics=("parallel",)),
        cost_estimate=cost,
    )(img_flat, eps_flat, side_pad, xw_s, ow_s, ob_s)

    # finish the MSE in the wrapper (valid rows only; padded rows dropped)
    noise_loss = jnp.sum(sse[:B, 0]) / (B * cfg.num_channels * P)
    eps_theta = eps_theta_flat[:B].reshape(B, cfg.num_channels, H, W)
    return noise_loss, eps_theta, epsilon


# ----------------------------------------------------------------------------
# Pure-JAX reference for verification (same math as the kernel)
# ----------------------------------------------------------------------------
def reference_forward(params, cfg, images, conditions, key):
    B = conditions.shape[0]
    H, W = cfg.input_dim
    P = H * W
    NC = cfg.num_classes
    k_mask, k_t, k_eps = jax.random.split(key, 3)
    one_hot = jax.nn.one_hot(conditions, NC, dtype=jnp.float32)
    mask_p = (jax.random.uniform(k_mask, (B,)) > cfg.mask_p).astype(jnp.float32)
    one_hot = one_hot * mask_p[:, None] - (1.0 - mask_p[:, None])
    t_s = jax.random.randint(k_t, (B,), 1, cfg.T + 1)
    epsilon = jax.random.normal(k_eps, images.shape, dtype=jnp.float32)
    sqrt_ab, sqrt_om_ab = scheduler_tables(cfg)
    sa = sqrt_ab[t_s - 1][:, None, None, None]
    sb = sqrt_om_ab[t_s - 1][:, None, None, None]
    tn = (t_s.astype(jnp.float32) / cfg.T)[:, None]

    x_t = images * sa + epsilon * sb                                  # (B,1,H,W)
    xw, tw, tb, cw, ow, ob = params
    x_flat = x_t.reshape(B, 1, P)                                     # (B,1,P)
    c_emb = (one_hot @ cw.T)[:, :, None]                              # (B,F,1)
    t_emb = tn[:, :, None] * tw[None, :, :] + tb[None, :, :]          # (B,F,1)
    h = jnp.maximum(xw[None] * x_flat + t_emb + c_emb, 0.0)           # (B,F,P)
    out = jnp.einsum('of,bfp->bop', ow, h) + ob[None]                 # (B,1,P)
    eps_theta = out.reshape(B, 1, H, W)
    loss = jnp.mean((eps_theta - epsilon) ** 2)
    return loss, eps_theta


# ----------------------------------------------------------------------------
if __name__ == "__main__":
    cfg = DMConfig()
    B = 2
    H, W = cfg.input_dim

    root = jax.random.PRNGKey(0)
    k_param, k_img, k_cond, k_fwd = jax.random.split(root, 4)

    params = init_params(cfg, k_param)
    images = jax.random.normal(k_img, (B, cfg.num_channels, H, W), jnp.float32)
    conditions = jax.random.randint(k_cond, (B,), 0, cfg.num_classes)

    loss, eps_theta, _ = conditional_ddpm_forward(params, cfg, images,
                                                  conditions, k_fwd)
    loss = jax.block_until_ready(loss)
    eps_theta = jax.block_until_ready(eps_theta)

    loss_ref, eps_theta_ref = reference_forward(params, cfg, images,
                                                conditions, k_fwd)
    loss_ref = jax.block_until_ready(loss_ref)

    assert eps_theta.shape == (B, cfg.num_channels, H, W)
    assert jnp.isfinite(loss)
    assert jnp.allclose(eps_theta, eps_theta_ref, rtol=1e-2, atol=1e-2)
    assert jnp.allclose(loss, loss_ref, rtol=1e-2, atol=1e-2)

    print("KERNEL_OK")
</pallas_src>

<mosaic_0001>
module attributes {stable_mosaic.version = 11 : i64} {
  func.func @ddpm_forward_kernel(%arg0: i32, %arg1: memref<8x256xf32, #tpu.memory_space<vmem>>, %arg2: memref<8x256xf32, #tpu.memory_space<vmem>>, %arg3: memref<8x34xf32, #tpu.memory_space<vmem>>, %arg4: memref<32xf32, #tpu.memory_space<smem>>, %arg5: memref<32xf32, #tpu.memory_space<smem>>, %arg6: memref<1xf32, #tpu.memory_space<smem>>, %arg7: memref<8x256xf32, #tpu.memory_space<vmem>>, %arg8: memref<8x1xf32, #tpu.memory_space<vmem>>) attributes {dimension_semantics = [#tpu.dimension_semantics<parallel>], iteration_bounds = array<i64: 1>, scalar_prefetch = 0 : i64, scratch_operands = 0 : i64, tpu.core_type = #tpu.core_type<tc>, window_params = [{transform_indices = @transform_0, window_bounds = array<i64: 8, 256>}, {transform_indices = @transform_1, window_bounds = array<i64: 8, 256>}, {transform_indices = @transform_2, window_bounds = array<i64: 8, 34>}, {transform_indices = @transform_3, window_bounds = array<i64: 32>}, {transform_indices = @transform_4, window_bounds = array<i64: 32>}, {transform_indices = @transform_5, window_bounds = array<i64: 1>}, {transform_indices = @transform_6, window_bounds = array<i64: 8, 256>}, {transform_indices = @transform_7, window_bounds = array<i64: 8, 1>}]} {
    %c0 = arith.constant 0 : index
    %0 = memref.load %arg6[%c0] : memref<1xf32, #tpu.memory_space<smem>>
    %c0_i32 = arith.constant 0 : i32
    %c8_i32 = arith.constant 8 : i32
    %1 = arith.muli %c0_i32, %c8_i32 : i32
    %2 = tpu.assume_multiple %1, 8 : i32
    %3 = arith.index_cast %2 : i32 to index
    %c0_0 = arith.constant 0 : index
    %4 = vector.load %arg1[%3, %c0_0] : memref<8x256xf32, #tpu.memory_space<vmem>>, vector<8x256xf32>
    %5 = arith.index_cast %2 : i32 to index
    %c0_1 = arith.constant 0 : index
    %6 = vector.load %arg2[%5, %c0_1] : memref<8x256xf32, #tpu.memory_space<vmem>>, vector<8x256xf32>
    %7 = arith.index_cast %2 : i32 to index
    %c0_2 = arith.constant 0 : index
    %8 = vector.load %arg3[%7, %c0_2] : memref<8x34xf32, #tpu.memory_space<vmem>>, vector<8x34xf32>
    %9 = vector.extract_strided_slice %8 {offsets = [0, 32], sizes = [8, 1], strides = [1, 1]} : vector<8x34xf32> to vector<8x1xf32>
    %10 = vector.extract_strided_slice %8 {offsets = [0, 33], sizes = [8, 1], strides = [1, 1]} : vector<8x34xf32> to vector<8x1xf32>
    %11 = vector.broadcast %9 : vector<8x1xf32> to vector<8x256xf32>
    %12 = arith.mulf %4, %11 : vector<8x256xf32>
    %13 = vector.broadcast %10 : vector<8x1xf32> to vector<8x256xf32>
    %14 = arith.mulf %6, %13 : vector<8x256xf32>
    %15 = arith.addf %12, %14 : vector<8x256xf32>
    %cst = arith.constant 0.000000e+00 : f32
    %16 = vector.broadcast %cst : f32 to vector<8x256xf32>
    %c0_3 = arith.constant 0 : index
    %17 = memref.load %arg4[%c0_3] : memref<32xf32, #tpu.memory_space<smem>>
    %18 = vector.broadcast %17 : f32 to vector<8x256xf32>
    %19 = arith.mulf %18, %15 : vector<8x256xf32>
    %20 = vector.extract_strided_slice %8 {offsets = [0, 0], sizes = [8, 1], strides = [1, 1]} : vector<8x34xf32> to vector<8x1xf32>
    %21 = vector.broadcast %20 : vector<8x1xf32> to vector<8x256xf32>
    %22 = arith.addf %19, %21 : vector<8x256xf32>
    %cst_4 = arith.constant 0.000000e+00 : f32
    %23 = vector.broadcast %cst_4 : f32 to vector<8x256xf32>
    %24 = arith.maximumf %22, %23 : vector<8x256xf32>
    %c0_5 = arith.constant 0 : index
    %25 = memref.load %arg5[%c0_5] : memref<32xf32, #tpu.memory_space<smem>>
    %26 = vector.broadcast %25 : f32 to vector<8x256xf32>
    %27 = arith.mulf %26, %24 : vector<8x256xf32>
    %28 = arith.addf %16, %27 : vector<8x256xf32>
    %c1 = arith.constant 1 : index
    %29 = memref.load %arg4[%c1] : memref<32xf32, #tpu.memory_space<smem>>
    %30 = vector.broadcast %29 : f32 to vector<8x256xf32>
    %31 = arith.mulf %30, %15 : vector<8x256xf32>
    %32 = vector.extract_strided_slice %8 {offsets = [0, 1], sizes = [8, 1], strides = [1, 1]} : vector<8x34xf32> to vector<8x1xf32>
    %33 = vector.broadcast %32 : vector<8x1xf32> to vector<8x256xf32>
    %34 = arith.addf %31, %33 : vector<8x256xf32>
    %cst_6 = arith.constant 0.000000e+00 : f32
    %35 = vector.broadcast %cst_6 : f32 to vector<8x256xf32>
    %36 = arith.maximumf %34, %35 : vector<8x256xf32>
    %c1_7 = arith.constant 1 : index
    %37 = memref.load %arg5[%c1_7] : memref<32xf32, #tpu.memory_space<smem>>
    %38 = vector.broadcast %37 : f32 to vector<8x256xf32>
    %39 = arith.mulf %38, %36 : vector<8x256xf32>
    %40 = arith.addf %28, %39 : vector<8x256xf32>
    %c2 = arith.constant 2 : index
    %41 = memref.load %arg4[%c2] : memref<32xf32, #tpu.memory_space<smem>>
    %42 = vector.broadcast %41 : f32 to vector<8x256xf32>
    %43 = arith.mulf %42, %15 : vector<8x256xf32>
    %44 = vector.extract_strided_slice %8 {offsets = [0, 2], sizes = [8, 1], strides = [1, 1]} : vector<8x34xf32> to vector<8x1xf32>
    %45 = vector.broadcast %44 : vector<8x1xf32> to vector<8x256xf32>
    %46 = arith.addf %43, %45 : vector<8x256xf32>
    %cst_8 = arith.constant 0.000000e+00 : f32
    %47 = vector.broadcast %cst_8 : f32 to vector<8x256xf32>
    %48 = arith.maximumf %46, %47 : vector<8x256xf32>
    %c2_9 = arith.constant 2 : index
    %49 = memref.load %arg5[%c2_9] : memref<32xf32, #tpu.memory_space<smem>>
    %50 = vector.broadcast %49 : f32 to vector<8x256xf32>
    %51 = arith.mulf %50, %48 : vector<8x256xf32>
    %52 = arith.addf %40, %51 : vector<8x256xf32>
    %c3 = arith.constant 3 : index
    %53 = memref.load %arg4[%c3] : memref<32xf32, #tpu.memory_space<smem>>
    %54 = vector.broadcast %53 : f32 to vector<8x256xf32>
    %55 = arith.mulf %54, %15 : vector<8x256xf32>
    %56 = vector.extract_strided_slice %8 {offsets = [0, 3], sizes = [8, 1], strides = [1, 1]} : vector<8x34xf32> to vector<8x1xf32>
    %57 = vector.broadcast %56 : vector<8x1xf32> to vector<8x256xf32>
    %58 = arith.addf %55, %57 : vector<8x256xf32>
    %cst_10 = arith.constant 0.000000e+00 : f32
    %59 = vector.broadcast %cst_10 : f32 to vector<8x256xf32>
    %60 = arith.maximumf %58, %59 : vector<8x256xf32>
    %c3_11 = arith.constant 3 : index
    %61 = memref.load %arg5[%c3_11] : memref<32xf32, #tpu.memory_space<smem>>
    %62 = vector.broadcast %61 : f32 to vector<8x256xf32>
    %63 = arith.mulf %62, %60 : vector<8x256xf32>
    %64 = arith.addf %52, %63 : vector<8x256xf32>
    %c4 = arith.constant 4 : index
    %65 = memref.load %arg4[%c4] : memref<32xf32, #tpu.memory_space<smem>>
    %66 = vector.broadcast %65 : f32 to vector<8x256xf32>
    %67 = arith.mulf %66, %15 : vector<8x256xf32>
    %68 = vector.extract_strided_slice %8 {offsets = [0, 4], sizes = [8, 1], strides = [1, 1]} : vector<8x34xf32> to vector<8x1xf32>
    %69 = vector.broadcast %68 : vector<8x1xf32> to vector<8x256xf32>
    %70 = arith.addf %67, %69 : vector<8x256xf32>
    %cst_12 = arith.constant 0.000000e+00 : f32
    %71 = vector.broadcast %cst_12 : f32 to vector<8x256xf32>
    %72 = arith.maximumf %70, %71 : vector<8x256xf32>
    %c4_13 = arith.constant 4 : index
    %73 = memref.load %arg5[%c4_13] : memref<32xf32, #tpu.memory_space<smem>>
    %74 = vector.broadcast %73 : f32 to vector<8x256xf32>
    %75 = arith.mulf %74, %72 : vector<8x256xf32>
    %76 = arith.addf %64, %75 : vector<8x256xf32>
    %c5 = arith.constant 5 : index
    %77 = memref.load %arg4[%c5] : memref<32xf32, #tpu.memory_space<smem>>
    %78 = vector.broadcast %77 : f32 to vector<8x256xf32>
    %79 = arith.mulf %78, %15 : vector<8x256xf32>
    %80 = vector.extract_strided_slice %8 {offsets = [0, 5], sizes = [8, 1], strides = [1, 1]} : vector<8x34xf32> to vector<8x1xf32>
    %81 = vector.broadcast %80 : vector<8x1xf32> to vector<8x256xf32>
    %82 = arith.addf %79, %81 : vector<8x256xf32>
    %cst_14 = arith.constant 0.000000e+00 : f32
    %83 = vector.broadcast %cst_14 : f32 to vector<8x256xf32>
    %84 = arith.maximumf %82, %83 : vector<8x256xf32>
    %c5_15 = arith.constant 5 : index
    %85 = memref.load %arg5[%c5_15] : memref<32xf32, #tpu.memory_space<smem>>
    %86 = vector.broadcast %85 : f32 to vector<8x256xf32>
    %87 = arith.mulf %86, %84 : vector<8x256xf32>
    %88 = arith.addf %76, %87 : vector<8x256xf32>
    %c6 = arith.constant 6 : index
    %89 = memref.load %arg4[%c6] : memref<32xf32, #tpu.memory_space<smem>>
    %90 = vector.broadcast %89 : f32 to vector<8x256xf32>
    %91 = arith.mulf %90, %15 : vector<8x256xf32>
    %92 = vector.extract_strided_slice %8 {offsets = [0, 6], sizes = [8, 1], strides = [1, 1]} : vector<8x34xf32> to vector<8x1xf32>
    %93 = vector.broadcast %92 : vector<8x1xf32> to vector<8x256xf32>
    %94 = arith.addf %91, %93 : vector<8x256xf32>
    %cst_16 = arith.constant 0.000000e+00 : f32
    %95 = vector.broadcast %cst_16 : f32 to vector<8x256xf32>
    %96 = arith.maximumf %94, %95 : vector<8x256xf32>
    %c6_17 = arith.constant 6 : index
    %97 = memref.load %arg5[%c6_17] : memref<32xf32, #tpu.memory_space<smem>>
    %98 = vector.broadcast %97 : f32 to vector<8x256xf32>
    %99 = arith.mulf %98, %96 : vector<8x256xf32>
    %100 = arith.addf %88, %99 : vector<8x256xf32>
    %c7 = arith.constant 7 : index
    %101 = memref.load %arg4[%c7] : memref<32xf32, #tpu.memory_space<smem>>
    %102 = vector.broadcast %101 : f32 to vector<8x256xf32>
    %103 = arith.mulf %102, %15 : vector<8x256xf32>
    %104 = vector.extract_strided_slice %8 {offsets = [0, 7], sizes = [8, 1], strides = [1, 1]} : vector<8x34xf32> to vector<8x1xf32>
    %105 = vector.broadcast %104 : vector<8x1xf32> to vector<8x256xf32>
    %106 = arith.addf %103, %105 : vector<8x256xf32>
    %cst_18 = arith.constant 0.000000e+00 : f32
    %107 = vector.broadcast %cst_18 : f32 to vector<8x256xf32>
    %108 = arith.maximumf %106, %107 : vector<8x256xf32>
    %c7_19 = arith.constant 7 : index
    %109 = memref.load %arg5[%c7_19] : memref<32xf32, #tpu.memory_space<smem>>
    %110 = vector.broadcast %109 : f32 to vector<8x256xf32>
    %111 = arith.mulf %110, %108 : vector<8x256xf32>
    %112 = arith.addf %100, %111 : vector<8x256xf32>
    %c8 = arith.constant 8 : index
    %113 = memref.load %arg4[%c8] : memref<32xf32, #tpu.memory_space<smem>>
    %114 = vector.broadcast %113 : f32 to vector<8x256xf32>
    %115 = arith.mulf %114, %15 : vector<8x256xf32>
    %116 = vector.extract_strided_slice %8 {offsets = [0, 8], sizes = [8, 1], strides = [1, 1]} : vector<8x34xf32> to vector<8x1xf32>
    %117 = vector.broadcast %116 : vector<8x1xf32> to vector<8x256xf32>
    %118 = arith.addf %115, %117 : vector<8x256xf32>
    %cst_20 = arith.constant 0.000000e+00 : f32
    %119 = vector.broadcast %cst_20 : f32 to vector<8x256xf32>
    %120 = arith.maximumf %118, %119 : vector<8x256xf32>
    %c8_21 = arith.constant 8 : index
    %121 = memref.load %arg5[%c8_21] : memref<32xf32, #tpu.memory_space<smem>>
    %122 = vector.broadcast %121 : f32 to vector<8x256xf32>
    %123 = arith.mulf %122, %120 : vector<8x256xf32>
    %124 = arith.addf %112, %123 : vector<8x256xf32>
    %c9 = arith.constant 9 : index
    %125 = memref.load %arg4[%c9] : memref<32xf32, #tpu.memory_space<smem>>
    %126 = vector.broadcast %125 : f32 to vector<8x256xf32>
    %127 = arith.mulf %126, %15 : vector<8x256xf32>
    %128 = vector.extract_strided_slice %8 {offsets = [0, 9], sizes = [8, 1], strides = [1, 1]} : vector<8x34xf32> to vector<8x1xf32>
    %129 = vector.broadcast %128 : vector<8x1xf32> to vector<8x256xf32>
    %130 = arith.addf %127, %129 : vector<8x256xf32>
    %cst_22 = arith.constant 0.000000e+00 : f32
    %131 = vector.broadcast %cst_22 : f32 to vector<8x256xf32>
    %132 = arith.maximumf %130, %131 : vector<8x256xf32>
    %c9_23 = arith.constant 9 : index
    %133 = memref.load %arg5[%c9_23] : memref<32xf32, #tpu.memory_space<smem>>
    %134 = vector.broadcast %133 : f32 to vector<8x256xf32>
    %135 = arith.mulf %134, %132 : vector<8x256xf32>
    %136 = arith.addf %124, %135 : vector<8x256xf32>
    %c10 = arith.constant 10 : index
    %137 = memref.load %arg4[%c10] : memref<32xf32, #tpu.memory_space<smem>>
    %138 = vector.broadcast %137 : f32 to vector<8x256xf32>
    %139 = arith.mulf %138, %15 : vector<8x256xf32>
    %140 = vector.extract_strided_slice %8 {offsets = [0, 10], sizes = [8, 1], strides = [1, 1]} : vector<8x34xf32> to vector<8x1xf32>
    %141 = vector.broadcast %140 : vector<8x1xf32> to vector<8x256xf32>
    %142 = arith.addf %139, %141 : vector<8x256xf32>
    %cst_24 = arith.constant 0.000000e+00 : f32
    %143 = vector.broadcast %cst_24 : f32 to vector<8x256xf32>
    %144 = arith.maximumf %142, %143 : vector<8x256xf32>
    %c10_25 = arith.constant 10 : index
    %145 = memref.load %arg5[%c10_25] : memref<32xf32, #tpu.memory_space<smem>>
    %146 = vector.broadcast %145 : f32 to vector<8x256xf32>
    %147 = arith.mulf %146, %144 : vector<8x256xf32>
    %148 = arith.addf %136, %147 : vector<8x256xf32>
    %c11 = arith.constant 11 : index
    %149 = memref.load %arg4[%c11] : memref<32xf32, #tpu.memory_space<smem>>
    %150 = vector.broadcast %149 : f32 to vector<8x256xf32>
    %151 = arith.mulf %150, %15 : vector<8x256xf32>
    %152 = vector.extract_strided_slice %8 {offsets = [0, 11], sizes = [8, 1], strides = [1, 1]} : vector<8x34xf32> to vector<8x1xf32>
    %153 = vector.broadcast %152 : vector<8x1xf32> to vector<8x256xf32>
    %154 = arith.addf %151, %153 : vector<8x256xf32>
    %cst_26 = arith.constant 0.000000e+00 : f32
    %155 = vector.broadcast %cst_26 : f32 to vector<8x256xf32>
    %156 = arith.maximumf %154, %155 : vector<8x256xf32>
    %c11_27 = arith.constant 11 : index
    %157 = memref.load %arg5[%c11_27] : memref<32xf32, #tpu.memory_space<smem>>
    %158 = vector.broadcast %157 : f32 to vector<8x256xf32>
    %159 = arith.mulf %158, %156 : vector<8x256xf32>
    %160 = arith.addf %148, %159 : vector<8x256xf32>
    %c12 = arith.constant 12 : index
    %161 = memref.load %arg4[%c12] : memref<32xf32, #tpu.memory_space<smem>>
    %162 = vector.broadcast %161 : f32 to vector<8x256xf32>
    %163 = arith.mulf %162, %15 : vector<8x256xf32>
    %164 = vector.extract_strided_slice %8 {offsets = [0, 12], sizes = [8, 1], strides = [1, 1]} : vector<8x34xf32> to vector<8x1xf32>
    %165 = vector.broadcast %164 : vector<8x1xf32> to vector<8x256xf32>
    %166 = arith.addf %163, %165 : vector<8x256xf32>
    %cst_28 = arith.constant 0.000000e+00 : f32
    %167 = vector.broadcast %cst_28 : f32 to vector<8x256xf32>
    %168 = arith.maximumf %166, %167 : vector<8x256xf32>
    %c12_29 = arith.constant 12 : index
    %169 = memref.load %arg5[%c12_29] : memref<32xf32, #tpu.memory_space<smem>>
    %170 = vector.broadcast %169 : f32 to vector<8x256xf32>
    %171 = arith.mulf %170, %168 : vector<8x256xf32>
    %172 = arith.addf %160, %171 : vector<8x256xf32>
    %c13 = arith.constant 13 : index
    %173 = memref.load %arg4[%c13] : memref<32xf32, #tpu.memory_space<smem>>
    %174 = vector.broadcast %173 : f32 to vector<8x256xf32>
    %175 = arith.mulf %174, %15 : vector<8x256xf32>
    %176 = vector.extract_strided_slice %8 {offsets = [0, 13], sizes = [8, 1], strides = [1, 1]} : vector<8x34xf32> to vector<8x1xf32>
    %177 = vector.broadcast %176 : vector<8x1xf32> to vector<8x256xf32>
    %178 = arith.addf %175, %177 : vector<8x256xf32>
    %cst_30 = arith.constant 0.000000e+00 : f32
    %179 = vector.broadcast %cst_30 : f32 to vector<8x256xf32>
    %180 = arith.maximumf %178, %179 : vector<8x256xf32>
    %c13_31 = arith.constant 13 : index
    %181 = memref.load %arg5[%c13_31] : memref<32xf32, #tpu.memory_space<smem>>
    %182 = vector.broadcast %181 : f32 to vector<8x256xf32>
    %183 = arith.mulf %182, %180 : vector<8x256xf32>
    %184 = arith.addf %172, %183 : vector<8x256xf32>
    %c14 = arith.constant 14 : index
    %185 = memref.load %arg4[%c14] : memref<32xf32, #tpu.memory_space<smem>>
    %186 = vector.broadcast %185 : f32 to vector<8x256xf32>
    %187 = arith.mulf %186, %15 : vector<8x256xf32>
    %188 = vector.extract_strided_slice %8 {offsets = [0, 14], sizes = [8, 1], strides = [1, 1]} : vector<8x34xf32> to vector<8x1xf32>
    %189 = vector.broadcast %188 : vector<8x1xf32> to vector<8x256xf32>
    %190 = arith.addf %187, %189 : vector<8x256xf32>
    %cst_32 = arith.constant 0.000000e+00 : f32
    %191 = vector.broadcast %cst_32 : f32 to vector<8x256xf32>
    %192 = arith.maximumf %190, %191 : vector<8x256xf32>
    %c14_33 = arith.constant 14 : index
    %193 = memref.load %arg5[%c14_33] : memref<32xf32, #tpu.memory_space<smem>>
    %194 = vector.broadcast %193 : f32 to vector<8x256xf32>
    %195 = arith.mulf %194, %192 : vector<8x256xf32>
    %196 = arith.addf %184, %195 : vector<8x256xf32>
    %c15 = arith.constant 15 : index
    %197 = memref.load %arg4[%c15] : memref<32xf32, #tpu.memory_space<smem>>
    %198 = vector.broadcast %197 : f32 to vector<8x256xf32>
    %199 = arith.mulf %198, %15 : vector<8x256xf32>
    %200 = vector.extract_strided_slice %8 {offsets = [0, 15], sizes = [8, 1], strides = [1, 1]} : vector<8x34xf32> to vector<8x1xf32>
    %201 = vector.broadcast %200 : vector<8x1xf32> to vector<8x256xf32>
    %202 = arith.addf %199, %201 : vector<8x256xf32>
    %cst_34 = arith.constant 0.000000e+00 : f32
    %203 = vector.broadcast %cst_34 : f32 to vector<8x256xf32>
    %204 = arith.maximumf %202, %203 : vector<8x256xf32>
    %c15_35 = arith.constant 15 : index
    %205 = memref.load %arg5[%c15_35] : memref<32xf32, #tpu.memory_space<smem>>
    %206 = vector.broadcast %205 : f32 to vector<8x256xf32>
    %207 = arith.mulf %206, %204 : vector<8x256xf32>
    %208 = arith.addf %196, %207 : vector<8x256xf32>
    %c16 = arith.constant 16 : index
    %209 = memref.load %arg4[%c16] : memref<32xf32, #tpu.memory_space<smem>>
    %210 = vector.broadcast %209 : f32 to vector<8x256xf32>
    %211 = arith.mulf %210, %15 : vector<8x256xf32>
    %212 = vector.extract_strided_slice %8 {offsets = [0, 16], sizes = [8, 1], strides = [1, 1]} : vector<8x34xf32> to vector<8x1xf32>
    %213 = vector.broadcast %212 : vector<8x1xf32> to vector<8x256xf32>
    %214 = arith.addf %211, %213 : vector<8x256xf32>
    %cst_36 = arith.constant 0.000000e+00 : f32
    %215 = vector.broadcast %cst_36 : f32 to vector<8x256xf32>
    %216 = arith.maximumf %214, %215 : vector<8x256xf32>
    %c16_37 = arith.constant 16 : index
    %217 = memref.load %arg5[%c16_37] : memref<32xf32, #tpu.memory_space<smem>>
    %218 = vector.broadcast %217 : f32 to vector<8x256xf32>
    %219 = arith.mulf %218, %216 : vector<8x256xf32>
    %220 = arith.addf %208, %219 : vector<8x256xf32>
    %c17 = arith.constant 17 : index
    %221 = memref.load %arg4[%c17] : memref<32xf32, #tpu.memory_space<smem>>
    %222 = vector.broadcast %221 : f32 to vector<8x256xf32>
    %223 = arith.mulf %222, %15 : vector<8x256xf32>
    %224 = vector.extract_strided_slice %8 {offsets = [0, 17], sizes = [8, 1], strides = [1, 1]} : vector<8x34xf32> to vector<8x1xf32>
    %225 = vector.broadcast %224 : vector<8x1xf32> to vector<8x256xf32>
    %226 = arith.addf %223, %225 : vector<8x256xf32>
    %cst_38 = arith.constant 0.000000e+00 : f32
    %227 = vector.broadcast %cst_38 : f32 to vector<8x256xf32>
    %228 = arith.maximumf %226, %227 : vector<8x256xf32>
    %c17_39 = arith.constant 17 : index
    %229 = memref.load %arg5[%c17_39] : memref<32xf32, #tpu.memory_space<smem>>
    %230 = vector.broadcast %229 : f32 to vector<8x256xf32>
    %231 = arith.mulf %230, %228 : vector<8x256xf32>
    %232 = arith.addf %220, %231 : vector<8x256xf32>
    %c18 = arith.constant 18 : index
    %233 = memref.load %arg4[%c18] : memref<32xf32, #tpu.memory_space<smem>>
    %234 = vector.broadcast %233 : f32 to vector<8x256xf32>
    %235 = arith.mulf %234, %15 : vector<8x256xf32>
    %236 = vector.extract_strided_slice %8 {offsets = [0, 18], sizes = [8, 1], strides = [1, 1]} : vector<8x34xf32> to vector<8x1xf32>
    %237 = vector.broadcast %236 : vector<8x1xf32> to vector<8x256xf32>
    %238 = arith.addf %235, %237 : vector<8x256xf32>
    %cst_40 = arith.constant 0.000000e+00 : f32
    %239 = vector.broadcast %cst_40 : f32 to vector<8x256xf32>
    %240 = arith.maximumf %238, %239 : vector<8x256xf32>
    %c18_41 = arith.constant 18 : index
    %241 = memref.load %arg5[%c18_41] : memref<32xf32, #tpu.memory_space<smem>>
    %242 = vector.broadcast %241 : f32 to vector<8x256xf32>
    %243 = arith.mulf %242, %240 : vector<8x256xf32>
    %244 = arith.addf %232, %243 : vector<8x256xf32>
    %c19 = arith.constant 19 : index
    %245 = memref.load %arg4[%c19] : memref<32xf32, #tpu.memory_space<smem>>
    %246 = vector.broadcast %245 : f32 to vector<8x256xf32>
    %247 = arith.mulf %246, %15 : vector<8x256xf32>
    %248 = vector.extract_strided_slice %8 {offsets = [0, 19], sizes = [8, 1], strides = [1, 1]} : vector<8x34xf32> to vector<8x1xf32>
    %249 = vector.broadcast %248 : vector<8x1xf32> to vector<8x256xf32>
    %250 = arith.addf %247, %249 : vector<8x256xf32>
    %cst_42 = arith.constant 0.000000e+00 : f32
    %251 = vector.broadcast %cst_42 : f32 to vector<8x256xf32>
    %252 = arith.maximumf %250, %251 : vector<8x256xf32>
    %c19_43 = arith.constant 19 : index
    %253 = memref.load %arg5[%c19_43] : memref<32xf32, #tpu.memory_space<smem>>
    %254 = vector.broadcast %253 : f32 to vector<8x256xf32>
    %255 = arith.mulf %254, %252 : vector<8x256xf32>
    %256 = arith.addf %244, %255 : vector<8x256xf32>
    %c20 = arith.constant 20 : index
    %257 = memref.load %arg4[%c20] : memref<32xf32, #tpu.memory_space<smem>>
    %258 = vector.broadcast %257 : f32 to vector<8x256xf32>
    %259 = arith.mulf %258, %15 : vector<8x256xf32>
    %260 = vector.extract_strided_slice %8 {offsets = [0, 20], sizes = [8, 1], strides = [1, 1]} : vector<8x34xf32> to vector<8x1xf32>
    %261 = vector.broadcast %260 : vector<8x1xf32> to vector<8x256xf32>
    %262 = arith.addf %259, %261 : vector<8x256xf32>
    %cst_44 = arith.constant 0.000000e+00 : f32
    %263 = vector.broadcast %cst_44 : f32 to vector<8x256xf32>
    %264 = arith.maximumf %262, %263 : vector<8x256xf32>
    %c20_45 = arith.constant 20 : index
    %265 = memref.load %arg5[%c20_45] : memref<32xf32, #tpu.memory_space<smem>>
    %266 = vector.broadcast %265 : f32 to vector<8x256xf32>
    %267 = arith.mulf %266, %264 : vector<8x256xf32>
    %268 = arith.addf %256, %267 : vector<8x256xf32>
    %c21 = arith.constant 21 : index
    %269 = memref.load %arg4[%c21] : memref<32xf32, #tpu.memory_space<smem>>
    %270 = vector.broadcast %269 : f32 to vector<8x256xf32>
    %271 = arith.mulf %270, %15 : vector<8x256xf32>
    %272 = vector.extract_strided_slice %8 {offsets = [0, 21], sizes = [8, 1], strides = [1, 1]} : vector<8x34xf32> to vector<8x1xf32>
    %273 = vector.broadcast %272 : vector<8x1xf32> to vector<8x256xf32>
    %274 = arith.addf %271, %273 : vector<8x256xf32>
    %cst_46 = arith.constant 0.000000e+00 : f32
    %275 = vector.broadcast %cst_46 : f32 to vector<8x256xf32>
    %276 = arith.maximumf %274, %275 : vector<8x256xf32>
    %c21_47 = arith.constant 21 : index
    %277 = memref.load %arg5[%c21_47] : memref<32xf32, #tpu.memory_space<smem>>
    %278 = vector.broadcast %277 : f32 to vector<8x256xf32>
    %279 = arith.mulf %278, %276 : vector<8x256xf32>
    %280 = arith.addf %268, %279 : vector<8x256xf32>
    %c22 = arith.constant 22 : index
    %281 = memref.load %arg4[%c22] : memref<32xf32, #tpu.memory_space<smem>>
    %282 = vector.broadcast %281 : f32 to vector<8x256xf32>
    %283 = arith.mulf %282, %15 : vector<8x256xf32>
    %284 = vector.extract_strided_slice %8 {offsets = [0, 22], sizes = [8, 1], strides = [1, 1]} : vector<8x34xf32> to vector<8x1xf32>
    %285 = vector.broadcast %284 : vector<8x1xf32> to vector<8x256xf32>
    %286 = arith.addf %283, %285 : vector<8x256xf32>
    %cst_48 = arith.constant 0.000000e+00 : f32
    %287 = vector.broadcast %cst_48 : f32 to vector<8x256xf32>
    %288 = arith.maximumf %286, %287 : vector<8x256xf32>
    %c22_49 = arith.constant 22 : index
    %289 = memref.load %arg5[%c22_49] : memref<32xf32, #tpu.memory_space<smem>>
    %290 = vector.broadcast %289 : f32 to vector<8x256xf32>
    %291 = arith.mulf %290, %288 : vector<8x256xf32>
    %292 = arith.addf %280, %291 : vector<8x256xf32>
    %c23 = arith.constant 23 : index
    %293 = memref.load %arg4[%c23] : memref<32xf32, #tpu.memory_space<smem>>
    %294 = vector.broadcast %293 : f32 to vector<8x256xf32>
    %295 = arith.mulf %294, %15 : vector<8x256xf32>
    %296 = vector.extract_strided_slice %8 {offsets = [0, 23], sizes = [8, 1], strides = [1, 1]} : vector<8x34xf32> to vector<8x1xf32>
    %297 = vector.broadcast %296 : vector<8x1xf32> to vector<8x256xf32>
    %298 = arith.addf %295, %297 : vector<8x256xf32>
    %cst_50 = arith.constant 0.000000e+00 : f32
    %299 = vector.broadcast %cst_50 : f32 to vector<8x256xf32>
    %300 = arith.maximumf %298, %299 : vector<8x256xf32>
    %c23_51 = arith.constant 23 : index
    %301 = memref.load %arg5[%c23_51] : memref<32xf32, #tpu.memory_space<smem>>
    %302 = vector.broadcast %301 : f32 to vector<8x256xf32>
    %303 = arith.mulf %302, %300 : vector<8x256xf32>
    %304 = arith.addf %292, %303 : vector<8x256xf32>
    %c24 = arith.constant 24 : index
    %305 = memref.load %arg4[%c24] : memref<32xf32, #tpu.memory_space<smem>>
    %306 = vector.broadcast %305 : f32 to vector<8x256xf32>
    %307 = arith.mulf %306, %15 : vector<8x256xf32>
    %308 = vector.extract_strided_slice %8 {offsets = [0, 24], sizes = [8, 1], strides = [1, 1]} : vector<8x34xf32> to vector<8x1xf32>
    %309 = vector.broadcast %308 : vector<8x1xf32> to vector<8x256xf32>
    %310 = arith.addf %307, %309 : vector<8x256xf32>
    %cst_52 = arith.constant 0.000000e+00 : f32
    %311 = vector.broadcast %cst_52 : f32 to vector<8x256xf32>
    %312 = arith.maximumf %310, %311 : vector<8x256xf32>
    %c24_53 = arith.constant 24 : index
    %313 = memref.load %arg5[%c24_53] : memref<32xf32, #tpu.memory_space<smem>>
    %314 = vector.broadcast %313 : f32 to vector<8x256xf32>
    %315 = arith.mulf %314, %312 : vector<8x256xf32>
    %316 = arith.addf %304, %315 : vector<8x256xf32>
    %c25 = arith.constant 25 : index
    %317 = memref.load %arg4[%c25] : memref<32xf32, #tpu.memory_space<smem>>
    %318 = vector.broadcast %317 : f32 to vector<8x256xf32>
    %319 = arith.mulf %318, %15 : vector<8x256xf32>
    %320 = vector.extract_strided_slice %8 {offsets = [0, 25], sizes = [8, 1], strides = [1, 1]} : vector<8x34xf32> to vector<8x1xf32>
    %321 = vector.broadcast %320 : vector<8x1xf32> to vector<8x256xf32>
    %322 = arith.addf %319, %321 : vector<8x256xf32>
    %cst_54 = arith.constant 0.000000e+00 : f32
    %323 = vector.broadcast %cst_54 : f32 to vector<8x256xf32>
    %324 = arith.maximumf %322, %323 : vector<8x256xf32>
    %c25_55 = arith.constant 25 : index
    %325 = memref.load %arg5[%c25_55] : memref<32xf32, #tpu.memory_space<smem>>
    %326 = vector.broadcast %325 : f32 to vector<8x256xf32>
    %327 = arith.mulf %326, %324 : vector<8x256xf32>
    %328 = arith.addf %316, %327 : vector<8x256xf32>
    %c26 = arith.constant 26 : index
    %329 = memref.load %arg4[%c26] : memref<32xf32, #tpu.memory_space<smem>>
    %330 = vector.broadcast %329 : f32 to vector<8x256xf32>
    %331 = arith.mulf %330, %15 : vector<8x256xf32>
    %332 = vector.extract_strided_slice %8 {offsets = [0, 26], sizes = [8, 1], strides = [1, 1]} : vector<8x34xf32> to vector<8x1xf32>
    %333 = vector.broadcast %332 : vector<8x1xf32> to vector<8x256xf32>
    %334 = arith.addf %331, %333 : vector<8x256xf32>
    %cst_56 = arith.constant 0.000000e+00 : f32
    %335 = vector.broadcast %cst_56 : f32 to vector<8x256xf32>
    %336 = arith.maximumf %334, %335 : vector<8x256xf32>
    %c26_57 = arith.constant 26 : index
    %337 = memref.load %arg5[%c26_57] : memref<32xf32, #tpu.memory_space<smem>>
    %338 = vector.broadcast %337 : f32 to vector<8x256xf32>
    %339 = arith.mulf %338, %336 : vector<8x256xf32>
    %340 = arith.addf %328, %339 : vector<8x256xf32>
    %c27 = arith.constant 27 : index
    %341 = memref.load %arg4[%c27] : memref<32xf32, #tpu.memory_space<smem>>
    %342 = vector.broadcast %341 : f32 to vector<8x256xf32>
    %343 = arith.mulf %342, %15 : vector<8x256xf32>
    %344 = vector.extract_strided_slice %8 {offsets = [0, 27], sizes = [8, 1], strides = [1, 1]} : vector<8x34xf32> to vector<8x1xf32>
    %345 = vector.broadcast %344 : vector<8x1xf32> to vector<8x256xf32>
    %346 = arith.addf %343, %345 : vector<8x256xf32>
    %cst_58 = arith.constant 0.000000e+00 : f32
    %347 = vector.broadcast %cst_58 : f32 to vector<8x256xf32>
    %348 = arith.maximumf %346, %347 : vector<8x256xf32>
    %c27_59 = arith.constant 27 : index
    %349 = memref.load %arg5[%c27_59] : memref<32xf32, #tpu.memory_space<smem>>
    %350 = vector.broadcast %349 : f32 to vector<8x256xf32>
    %351 = arith.mulf %350, %348 : vector<8x256xf32>
    %352 = arith.addf %340, %351 : vector<8x256xf32>
    %c28 = arith.constant 28 : index
    %353 = memref.load %arg4[%c28] : memref<32xf32, #tpu.memory_space<smem>>
    %354 = vector.broadcast %353 : f32 to vector<8x256xf32>
    %355 = arith.mulf %354, %15 : vector<8x256xf32>
    %356 = vector.extract_strided_slice %8 {offsets = [0, 28], sizes = [8, 1], strides = [1, 1]} : vector<8x34xf32> to vector<8x1xf32>
    %357 = vector.broadcast %356 : vector<8x1xf32> to vector<8x256xf32>
    %358 = arith.addf %355, %357 : vector<8x256xf32>
    %cst_60 = arith.constant 0.000000e+00 : f32
    %359 = vector.broadcast %cst_60 : f32 to vector<8x256xf32>
    %360 = arith.maximumf %358, %359 : vector<8x256xf32>
    %c28_61 = arith.constant 28 : index
    %361 = memref.load %arg5[%c28_61] : memref<32xf32, #tpu.memory_space<smem>>
    %362 = vector.broadcast %361 : f32 to vector<8x256xf32>
    %363 = arith.mulf %362, %360 : vector<8x256xf32>
    %364 = arith.addf %352, %363 : vector<8x256xf32>
    %c29 = arith.constant 29 : index
    %365 = memref.load %arg4[%c29] : memref<32xf32, #tpu.memory_space<smem>>
    %366 = vector.broadcast %365 : f32 to vector<8x256xf32>
    %367 = arith.mulf %366, %15 : vector<8x256xf32>
    %368 = vector.extract_strided_slice %8 {offsets = [0, 29], sizes = [8, 1], strides = [1, 1]} : vector<8x34xf32> to vector<8x1xf32>
    %369 = vector.broadcast %368 : vector<8x1xf32> to vector<8x256xf32>
    %370 = arith.addf %367, %369 : vector<8x256xf32>
    %cst_62 = arith.constant 0.000000e+00 : f32
    %371 = vector.broadcast %cst_62 : f32 to vector<8x256xf32>
    %372 = arith.maximumf %370, %371 : vector<8x256xf32>
    %c29_63 = arith.constant 29 : index
    %373 = memref.load %arg5[%c29_63] : memref<32xf32, #tpu.memory_space<smem>>
    %374 = vector.broadcast %373 : f32 to vector<8x256xf32>
    %375 = arith.mulf %374, %372 : vector<8x256xf32>
    %376 = arith.addf %364, %375 : vector<8x256xf32>
    %c30 = arith.constant 30 : index
    %377 = memref.load %arg4[%c30] : memref<32xf32, #tpu.memory_space<smem>>
    %378 = vector.broadcast %377 : f32 to vector<8x256xf32>
    %379 = arith.mulf %378, %15 : vector<8x256xf32>
    %380 = vector.extract_strided_slice %8 {offsets = [0, 30], sizes = [8, 1], strides = [1, 1]} : vector<8x34xf32> to vector<8x1xf32>
    %381 = vector.broadcast %380 : vector<8x1xf32> to vector<8x256xf32>
    %382 = arith.addf %379, %381 : vector<8x256xf32>
    %cst_64 = arith.constant 0.000000e+00 : f32
    %383 = vector.broadcast %cst_64 : f32 to vector<8x256xf32>
    %384 = arith.maximumf %382, %383 : vector<8x256xf32>
    %c30_65 = arith.constant 30 : index
    %385 = memref.load %arg5[%c30_65] : memref<32xf32, #tpu.memory_space<smem>>
    %386 = vector.broadcast %385 : f32 to vector<8x256xf32>
    %387 = arith.mulf %386, %384 : vector<8x256xf32>
    %388 = arith.addf %376, %387 : vector<8x256xf32>
    %c31 = arith.constant 31 : index
    %389 = memref.load %arg4[%c31] : memref<32xf32, #tpu.memory_space<smem>>
    %390 = vector.broadcast %389 : f32 to vector<8x256xf32>
    %391 = arith.mulf %390, %15 : vector<8x256xf32>
    %392 = vector.extract_strided_slice %8 {offsets = [0, 31], sizes = [8, 1], strides = [1, 1]} : vector<8x34xf32> to vector<8x1xf32>
    %393 = vector.broadcast %392 : vector<8x1xf32> to vector<8x256xf32>
    %394 = arith.addf %391, %393 : vector<8x256xf32>
    %cst_66 = arith.constant 0.000000e+00 : f32
    %395 = vector.broadcast %cst_66 : f32 to vector<8x256xf32>
    %396 = arith.maximumf %394, %395 : vector<8x256xf32>
    %c31_67 = arith.constant 31 : index
    %397 = memref.load %arg5[%c31_67] : memref<32xf32, #tpu.memory_space<smem>>
    %398 = vector.broadcast %397 : f32 to vector<8x256xf32>
    %399 = arith.mulf %398, %396 : vector<8x256xf32>
    %400 = arith.addf %388, %399 : vector<8x256xf32>
    %401 = vector.broadcast %0 : f32 to vector<8x256xf32>
    %402 = arith.addf %400, %401 : vector<8x256xf32>
    %403 = arith.index_cast %2 : i32 to index
    %c0_68 = arith.constant 0 : index
    %404 = vector.load %arg7[%403, %c0_68] : memref<8x256xf32, #tpu.memory_space<vmem>>, vector<8x256xf32>
    tpu.vector_store %arg7[%403, %c0_68], %402 {strides = array<i32>} : memref<8x256xf32, #tpu.memory_space<vmem>>, vector<8x256xf32>,
    %405 = arith.subf %402, %6 : vector<8x256xf32>
    %406 = arith.mulf %405, %405 : vector<8x256xf32>
    %cst_69 = arith.constant dense<0.000000e+00> : vector<8xf32>
    %407 = vector.multi_reduction <add>, %406, %cst_69 [1] : vector<8x256xf32> to vector<8xf32>
    %408 = vector.shape_cast %407 : vector<8xf32> to vector<8x1xf32>
    %409 = arith.index_cast %2 : i32 to index
    %c0_70 = arith.constant 0 : index
    %410 = vector.load %arg8[%409, %c0_70] : memref<8x1xf32, #tpu.memory_space<vmem>>, vector<8x1xf32>
    tpu.vector_store %arg8[%409, %c0_70], %408 {strides = array<i32>} : memref<8x1xf32, #tpu.memory_space<vmem>>, vector<8x1xf32>,
    %c1_i32 = arith.constant 1 : i32
    return
  }
  func.func @transform_0(%arg0: i32) -> (i32, i32) {
    %c0_i32 = arith.constant 0 : i32
    %c0_i32_0 = arith.constant 0 : i32
    return %arg0, %c0_i32 : i32, i32
  }
  func.func @transform_1(%arg0: i32) -> (i32, i32) {
    %c0_i32 = arith.constant 0 : i32
    %c0_i32_0 = arith.constant 0 : i32
    return %arg0, %c0_i32 : i32, i32
  }
  func.func @transform_2(%arg0: i32) -> (i32, i32) {
    %c0_i32 = arith.constant 0 : i32
    %c0_i32_0 = arith.constant 0 : i32
    return %arg0, %c0_i32 : i32, i32
  }
  func.func @transform_3(%arg0: i32) -> i32 {
    %c0_i32 = arith.constant 0 : i32
    %c0_i32_0 = arith.constant 0 : i32
    return %c0_i32 : i32
  }
  func.func @transform_4(%arg0: i32) -> i32 {
    %c0_i32 = arith.constant 0 : i32
    %c0_i32_0 = arith.constant 0 : i32
    return %c0_i32 : i32
  }
  func.func @transform_5(%arg0: i32) -> i32 {
    %c0_i32 = arith.constant 0 : i32
    %c0_i32_0 = arith.constant 0 : i32
    return %c0_i32 : i32
  }
  func.func @transform_6(%arg0: i32) -> (i32, i32) {
    %c0_i32 = arith.constant 0 : i32
    %c0_i32_0 = arith.constant 0 : i32
    return %arg0, %c0_i32 : i32, i32
  }
  func.func @transform_7(%arg0: i32) -> (i32, i32) {
    %c0_i32 = arith.constant 0 : i32
    %c0_i32_0 = arith.constant 0 : i32
    return %arg0, %c0_i32 : i32, i32
  }
}

</mosaic_0001>

<llo_original>
// kernel: tpu_custom_call.1
$region0: #{tpu_custom_call.1}
  #allocation0 [shape = 'u32[]', space=smem, size = 0x4, offset = 0x4, fixed_abs, tag = 'smem constant byte address 0x4 - core index']
  #allocation1 [shape = 'u32[144,128]{1,0:T(1,128)}', space=vmem, size = 0x12000, scoped, tag = 'internal scratch']
  #allocation2 [shape = 'f32[1]{0:T(128)S(6)}', space=smem, size = 0x200, scoped, tag = 'scoped memory for tpu_custom_call.1']
  %s0 = inlined_call_operand.hbm [shape: f32[8,256], index: 0, kind: input, shape index: {}]
  %s1 = inlined_call_operand.hbm [shape: f32[8,256], index: 1, kind: input, shape index: {}]
  %s2 = inlined_call_operand.vmem [shape: f32[8,34], index: 2, kind: input, shape index: {}]
  %s3 = inlined_call_operand.vmem [shape: f32[32], index: 3, kind: input, shape index: {}]
  %s4 = inlined_call_operand.vmem [shape: f32[32], index: 4, kind: input, shape index: {}]
  %s5 = inlined_call_operand.<no memory space> [shape: f32[1], index: 5, kind: input, shape index: {}]
  %s6 = inlined_call_operand.hbm [shape: f32[8,256], index: 6, kind: output, shape index: {0}]
  %s7 = inlined_call_operand.vmem [shape: f32[8,1], index: 7, kind: output, shape index: {1}]
  %8 = xla_tuple %s6, %s7
  %s9 = sld [smem:[#allocation0]]
  $region58: #{tpu_custom_call.1} parent=0
    _
  %s11 = ssub.s32 1, %s9
  %s12 = scalar_select 0, %s11, %s9
  %13 = sst [smem:[#allocation2]] %s5
  $region1: #{tpu_custom_call.1} parent=0
    #allocation3 [shape = 'u8[8192]{0}', space=vmem, size = 0x2000, scoped, tag = 'input window, operand 0, single buffered']
    #allocation4 [shape = 's32[1]{0}', space=sflag, size = 0x4, scoped, tag = 'scoped memory for tpu_custom_call.1']
    #allocation5 [shape = 's32[1]{0}', space=sflag, size = 0x4, scoped, tag = 'scoped memory for tpu_custom_call.1']
    #allocation6 [shape = 's32[1]{0}', space=sflag, size = 0x4, scoped, tag = 'scoped memory for tpu_custom_call.1']
    #allocation7 [shape = 'u8[8192]{0}', space=vmem, size = 0x2000, scoped, tag = 'input window, operand 1, single buffered']
    #allocation8 [shape = 's32[1]{0}', space=sflag, size = 0x4, scoped, tag = 'scoped memory for tpu_custom_call.1']
    #allocation9 [shape = 'u8[512]{0}', space=smem, size = 0x200, scoped, tag = 'input window, operand 3, single buffered']
    #allocation10 [shape = 'u8[512]{0}', space=smem, size = 0x200, scoped, tag = 'input window, operand 4, single buffered']
    #allocation11 [shape = 's32[1]{0}', space=sflag, size = 0x4, scoped, tag = 'scoped memory for tpu_custom_call.1']
    #allocation12 [shape = 'u8[8192]{0}', space=vmem, size = 0x2000, scoped, tag = 'output window, operand 0, single buffered']
    %14 = vsyncpa [#allocation4], 0
    %15 = vsyncpa [#allocation8], 0
    %16 = vsyncpa [#allocation6], 0
    %17 = vsyncpa [#allocation11], 0
    %18 = vsyncpa [#allocation5], 0
    // Predicated region
    $region2: #{tpu_custom_call.1} parent=1 // pred_check
      _
    $region3: #{tpu_custom_call.1} parent=1 // pred_check_branch
      %20 = sbr.rel (0) target = $region5
    $region4: #{tpu_custom_call.1} parent=1 // pred_region
      %s22 = ssub.s32 256, 256
      %23 = vsyncadd [#allocation4], %s22
      %s25 = sshll.u32 [#allocation3], 4
      %s26 = int_to_ptr.vmem [resolvable:$true] %s25
      %28 = dma.hbm_to_vmem [thread:$0]  %s0, 256, %s26, [#allocation4]
    $region5: #{tpu_custom_call.1} parent=1 // pred_fallthru
      _
    // Predicated region
    $region6: #{tpu_custom_call.1} parent=1 // pred_check
      _
    $region7: #{tpu_custom_call.1} parent=1 // pred_check_branch
      %30 = sbr.rel (0) target = $region9
    $region8: #{tpu_custom_call.1} parent=1 // pred_region
      %s32 = ssub.s32 256, 256
      %33 = vsyncadd [#allocation8], %s32
      %s35 = sshll.u32 [#allocation7], 4
      %s36 = int_to_ptr.vmem [resolvable:$true] %s35
      %38 = dma.hbm_to_vmem [thread:$0]  %s1, 256, %s36, [#allocation8]
    $region9: #{tpu_custom_call.1} parent=1 // pred_fallthru
      _
    // Predicated region
    $region10: #{tpu_custom_call.1} parent=1 // pred_check
      _
    $region11: #{tpu_custom_call.1} parent=1 // pred_check_branch
      %40 = sbr.rel (0) target = $region13
    $region12: #{tpu_custom_call.1} parent=1 // pred_region
      _
    $region13: #{tpu_custom_call.1} parent=1 // pred_fallthru
      _
    // Predicated region
    $region14: #{tpu_custom_call.1} parent=1 // pred_check
      _
    $region15: #{tpu_custom_call.1} parent=1 // pred_check_branch
      %42 = sbr.rel (0) target = $region17
    $region16: #{tpu_custom_call.1} parent=1 // pred_region
      %s44 = ssub.s32 16, 16
      %45 = vsyncadd [#allocation6], %s44
      %s47 = sshll.u32 %s3, 4
      %s48 = int_to_ptr.vmem [resolvable:$true] %s47
      %50 = dma.vmem_to_smem %s48, 16, [#allocation9], [#allocation6]
    $region17: #{tpu_custom_call.1} parent=1 // pred_fallthru
      _
    // Predicated region
    $region18: #{tpu_custom_call.1} parent=1 // pred_check
      _
    $region19: #{tpu_custom_call.1} parent=1 // pred_check_branch
      %52 = sbr.rel (0) target = $region21
    $region20: #{tpu_custom_call.1} parent=1 // pred_region
      %s54 = ssub.s32 16, 16
      %55 = vsyncadd [#allocation11], %s54
      %s57 = sshll.u32 %s4, 4
      %s58 = int_to_ptr.vmem [resolvable:$true] %s57
      %60 = dma.vmem_to_smem %s58, 16, [#allocation10], [#allocation11]
    $region21: #{tpu_custom_call.1} parent=1 // pred_fallthru
      _
    // Predicated region
    $region22: #{tpu_custom_call.1} parent=1 // pred_check
      _
    $region23: #{tpu_custom_call.1} parent=1 // pred_check_branch
      %62 = sbr.rel (0) target = $region25
    $region24: #{tpu_custom_call.1} parent=1 // pred_region
      _
    $region25: #{tpu_custom_call.1} parent=1 // pred_fallthru
      _
    // Predicated region
    $region26: #{tpu_custom_call.1} parent=1 // pred_check
      _
    $region27: #{tpu_custom_call.1} parent=1 // pred_check_branch
      %64 = sbr.rel (0) target = $region29
    $region28: #{tpu_custom_call.1} parent=1 // pred_region
      %65 = dma.done [#allocation4], 256
    $region29: #{tpu_custom_call.1} parent=1 // pred_fallthru
      _
    // Predicated region
    $region30: #{tpu_custom_call.1} parent=1 // pred_check
      _
    $region31: #{tpu_custom_call.1} parent=1 // pred_check_branch
      %67 = sbr.rel (0) target = $region33
    $region32: #{tpu_custom_call.1} parent=1 // pred_region
      %68 = dma.done [#allocation8], 256
    $region33: #{tpu_custom_call.1} parent=1 // pred_fallthru
      _
    // Predicated region
    $region34: #{tpu_custom_call.1} parent=1 // pred_check
      _
    $region35: #{tpu_custom_call.1} parent=1 // pred_check_branch
      %70 = sbr.rel (0) target = $region37
    $region36: #{tpu_custom_call.1} parent=1 // pred_region
      %71 = dma.done [#allocation6], 16
    $region37: #{tpu_custom_call.1} parent=1 // pred_fallthru
      _
    // Predicated region
    $region38: #{tpu_custom_call.1} parent=1 // pred_check
      _
    $region39: #{tpu_custom_call.1} parent=1 // pred_check_branch
      %73 = sbr.rel (0) target = $region41
    $region40: #{tpu_custom_call.1} parent=1 // pred_region
      %74 = dma.done [#allocation11], 16
    $region41: #{tpu_custom_call.1} parent=1 // pred_fallthru
      _
    %75 = sfence
    %s76 = sld [smem:[#allocation2]]
    %s77 = smul.u32 0, 2
    %s78 = smul.addr %s77, 8
    %s79 = scalar_lea.vmem [#allocation3], %s78
    %v80 = vld [vmem:[%s79] sm:$0xff]
    %v81 = vld [vmem:[%s79 + $0x8] sm:$0xff]
    %s82 = smul.addr %s77, 8
    %s83 = scalar_lea.vmem [#allocation7], %s82
    %v84 = vld [vmem:[%s83] sm:$0xff]
    %v85 = vld [vmem:[%s83 + $0x8] sm:$0xff]
    %v86 = vld [vmem:[%s2] sm:$0xff]
    %88 = vset.pattern.permute.xlu0 32
    %89 = vperm.xlu0 %88, %v86
    %v90 = vpop.permute.xlu0 %89
    %v92 = vmul.f32 %v80, %v90
    %v93 = vmul.f32 %v81, %v90
    %94 = vset.pattern.permute.xlu0 33
    %95 = vperm.xlu0 %94, %v86
    %v96 = vpop.permute.xlu0 %95
    %v98 = vmul.f32 %v84, %v96
    %v99 = vmul.f32 %v85, %v96
    %v100 = vadd.f32 %v92, %v98
    %v101 = vadd.f32 %v93, %v99
    %s102 = sld [smem:[#allocation9]]
    %v103 = vstv %s102
    %v104 = vmul.f32 %v103, %v100
    %v105 = vmul.f32 %v103, %v101
    %106 = vset.pattern.permute.xlu0 0
    %107 = vperm.xlu0 %106, %v86
    %v108 = vpop.permute.xlu0 %107
    %v110 = vadd.f32 %v104, %v108
    %v111 = vadd.f32 %v105, %v108
    %v112 = vmax.f32 %v110, 0.0
    %v113 = vmax.f32 %v111, 0.0
    %s114 = sld [smem:[#allocation10]]
    %v115 = vstv %s114
    %v116 = vmul.f32 %v115, %v112
    %v117 = vmul.f32 %v115, %v113
    %v118 = vadd.f32 %v116, 0.0
    %v119 = vadd.f32 %v117, 0.0
    %s120 = sld [smem:[#allocation9 + $0x1]]
    %v121 = vstv %s120
    %v122 = vmul.f32 %v121, %v100
    %v123 = vmul.f32 %v121, %v101
    %124 = vset.pattern.permute.xlu0 1
    %125 = vperm.xlu0 %124, %v86
    %v126 = vpop.permute.xlu0 %125
    %v128 = vadd.f32 %v122, %v126
    %v129 = vadd.f32 %v123, %v126
    %v130 = vmax.f32 %v128, 0.0
    %v131 = vmax.f32 %v129, 0.0
    %s132 = sld [smem:[#allocation10 + $0x1]]
    %v133 = vstv %s132
    %v134 = vmul.f32 %v133, %v130
    %v135 = vmul.f32 %v133, %v131
    %v136 = vadd.f32 %v118, %v134
    %v137 = vadd.f32 %v119, %v135
    %s138 = sld [smem:[#allocation9 + $0x2]]
    %v139 = vstv %s138
    %v140 = vmul.f32 %v139, %v100
    %v141 = vmul.f32 %v139, %v101
    %142 = vset.pattern.permute.xlu0 2
    %143 = vperm.xlu0 %142, %v86
    %v144 = vpop.permute.xlu0 %143
    %v146 = vadd.f32 %v140, %v144
    %v147 = vadd.f32 %v141, %v144
    %v148 = vmax.f32 %v146, 0.0
    %v149 = vmax.f32 %v147, 0.0
    %s150 = sld [smem:[#allocation10 + $0x2]]
    %v151 = vstv %s150
    %v152 = vmul.f32 %v151, %v148
    %v153 = vmul.f32 %v151, %v149
    %v154 = vadd.f32 %v136, %v152
    %v155 = vadd.f32 %v137, %v153
    %s156 = sld [smem:[#allocation9 + $0x3]]
    %v157 = vstv %s156
    %v158 = vmul.f32 %v157, %v100
    %v159 = vmul.f32 %v157, %v101
    %160 = vset.pattern.permute.xlu0 3
    %161 = vperm.xlu0 %160, %v86
    %v162 = vpop.permute.xlu0 %161
    %v164 = vadd.f32 %v158, %v162
    %v165 = vadd.f32 %v159, %v162
    %v166 = vmax.f32 %v164, 0.0
    %v167 = vmax.f32 %v165, 0.0
    %s168 = sld [smem:[#allocation10 + $0x3]]
    %v169 = vstv %s168
    %v170 = vmul.f32 %v169, %v166
    %v171 = vmul.f32 %v169, %v167
    %v172 = vadd.f32 %v154, %v170
    %v173 = vadd.f32 %v155, %v171
    %s174 = sld [smem:[#allocation9 + $0x4]]
    %v175 = vstv %s174
    %v176 = vmul.f32 %v175, %v100
    %v177 = vmul.f32 %v175, %v101
    %178 = vset.pattern.permute.xlu0 4
    %179 = vperm.xlu0 %178, %v86
    %v180 = vpop.permute.xlu0 %179
    %v182 = vadd.f32 %v176, %v180
    %v183 = vadd.f32 %v177, %v180
    %v184 = vmax.f32 %v182, 0.0
    %v185 = vmax.f32 %v183, 0.0
    %s186 = sld [smem:[#allocation10 + $0x4]]
    %v187 = vstv %s186
    %v188 = vmul.f32 %v187, %v184
    %v189 = vmul.f32 %v187, %v185
    %v190 = vadd.f32 %v172, %v188
    %v191 = vadd.f32 %v173, %v189
    %s192 = sld [smem:[#allocation9 + $0x5]]
    %v193 = vstv %s192
    %v194 = vmul.f32 %v193, %v100
    %v195 = vmul.f32 %v193, %v101
    %196 = vset.pattern.permute.xlu0 5
    %197 = vperm.xlu0 %196, %v86
    %v198 = vpop.permute.xlu0 %197
    %v200 = vadd.f32 %v194, %v198
    %v201 = vadd.f32 %v195, %v198
    %v202 = vmax.f32 %v200, 0.0
    %v203 = vmax.f32 %v201, 0.0
    %s204 = sld [smem:[#allocation10 + $0x5]]
    %v205 = vstv %s204
    %v206 = vmul.f32 %v205, %v202
    %v207 = vmul.f32 %v205, %v203
    %v208 = vadd.f32 %v190, %v206
    %v209 = vadd.f32 %v191, %v207
    %s210 = sld [smem:[#allocation9 + $0x6]]
    %v211 = vstv %s210
    %v212 = vmul.f32 %v211, %v100
    %v213 = vmul.f32 %v211, %v101
    %214 = vset.pattern.permute.xlu0 6
    %215 = vperm.xlu0 %214, %v86
    %v216 = vpop.permute.xlu0 %215
    %v218 = vadd.f32 %v212, %v216
    %v219 = vadd.f32 %v213, %v216
    %v220 = vmax.f32 %v218, 0.0
    %v221 = vmax.f32 %v219, 0.0
    %s222 = sld [smem:[#allocation10 + $0x6]]
    %v223 = vstv %s222
    %v224 = vmul.f32 %v223, %v220
    %v225 = vmul.f32 %v223, %v221
    %v226 = vadd.f32 %v208, %v224
    %v227 = vadd.f32 %v209, %v225
    %s228 = sld [smem:[#allocation9 + $0x7]]
    %v229 = vstv %s228
    %v230 = vmul.f32 %v229, %v100
    %v231 = vmul.f32 %v229, %v101
    %232 = vset.pattern.permute.xlu0 7
    %233 = vperm.xlu0 %232, %v86
    %v234 = vpop.permute.xlu0 %233
    %v236 = vadd.f32 %v230, %v234
    %v237 = vadd.f32 %v231, %v234
    %v238 = vmax.f32 %v236, 0.0
    %v239 = vmax.f32 %v237, 0.0
    %s240 = sld [smem:[#allocation10 + $0x7]]
    %v241 = vstv %s240
    %v242 = vmul.f32 %v241, %v238
    %v243 = vmul.f32 %v241, %v239
    %v244 = vadd.f32 %v226, %v242
    %v245 = vadd.f32 %v227, %v243
    %s246 = sld [smem:[#allocation9 + $0x8]]
    %v247 = vstv %s246
    %v248 = vmul.f32 %v247, %v100
    %v249 = vmul.f32 %v247, %v101
    %250 = vset.pattern.permute.xlu0 8
    %251 = vperm.xlu0 %250, %v86
    %v252 = vpop.permute.xlu0 %251
    %v254 = vadd.f32 %v248, %v252
    %v255 = vadd.f32 %v249, %v252
    %v256 = vmax.f32 %v254, 0.0
    %v257 = vmax.f32 %v255, 0.0
    %s258 = sld [smem:[#allocation10 + $0x8]]
    %v259 = vstv %s258
    %v260 = vmul.f32 %v259, %v256
    %v261 = vmul.f32 %v259, %v257
    %v262 = vadd.f32 %v244, %v260
    %v263 = vadd.f32 %v245, %v261
    %s264 = sld [smem:[#allocation9 + $0x9]]
    %v265 = vstv %s264
    %v266 = vmul.f32 %v265, %v100
    %v267 = vmul.f32 %v265, %v101
    %268 = vset.pattern.permute.xlu0 9
    %269 = vperm.xlu0 %268, %v86
    %v270 = vpop.permute.xlu0 %269
    %v272 = vadd.f32 %v266, %v270
    %v273 = vadd.f32 %v267, %v270
    %v274 = vmax.f32 %v272, 0.0
    %v275 = vmax.f32 %v273, 0.0
    %s276 = sld [smem:[#allocation10 + $0x9]]
    %v277 = vstv %s276
    %v278 = vmul.f32 %v277, %v274
    %v279 = vmul.f32 %v277, %v275
    %v280 = vadd.f32 %v262, %v278
    %v281 = vadd.f32 %v263, %v279
    %s282 = sld [smem:[#allocation9 + $0xa]]
    %v283 = vstv %s282
    %v284 = vmul.f32 %v283, %v100
    %v285 = vmul.f32 %v283, %v101
    %286 = vset.pattern.permute.xlu0 10
    %287 = vperm.xlu0 %286, %v86
    %v288 = vpop.permute.xlu0 %287
    %v290 = vadd.f32 %v284, %v288
    %v291 = vadd.f32 %v285, %v288
    %v292 = vmax.f32 %v290, 0.0
    %v293 = vmax.f32 %v291, 0.0
    %s294 = sld [smem:[#allocation10 + $0xa]]
    %v295 = vstv %s294
    %v296 = vmul.f32 %v295, %v292
    %v297 = vmul.f32 %v295, %v293
    %v298 = vadd.f32 %v280, %v296
    %v299 = vadd.f32 %v281, %v297
    %s300 = sld [smem:[#allocation9 + $0xb]]
    %v301 = vstv %s300
    %v302 = vmul.f32 %v301, %v100
    %v303 = vmul.f32 %v301, %v101
    %304 = vset.pattern.permute.xlu0 11
    %305 = vperm.xlu0 %304, %v86
    %v306 = vpop.permute.xlu0 %305
    %v308 = vadd.f32 %v302, %v306
    %v309 = vadd.f32 %v303, %v306
    %v310 = vmax.f32 %v308, 0.0
    %v311 = vmax.f32 %v309, 0.0
    %s312 = sld [smem:[#allocation10 + $0xb]]
    %v313 = vstv %s312
    %v314 = vmul.f32 %v313, %v310
    %v315 = vmul.f32 %v313, %v311
    %v316 = vadd.f32 %v298, %v314
    %v317 = vadd.f32 %v299, %v315
    %s318 = sld [smem:[#allocation9 + $0xc]]
    %v319 = vstv %s318
    %v320 = vmul.f32 %v319, %v100
    %v321 = vmul.f32 %v319, %v101
    %322 = vset.pattern.permute.xlu0 12
    %323 = vperm.xlu0 %322, %v86
    %v324 = vpop.permute.xlu0 %323
    %v326 = vadd.f32 %v320, %v324
    %v327 = vadd.f32 %v321, %v324
    %v328 = vmax.f32 %v326, 0.0
    %v329 = vmax.f32 %v327, 0.0
    %s330 = sld [smem:[#allocation10 + $0xc]]
    %v331 = vstv %s330
    %v332 = vmul.f32 %v331, %v328
    %v333 = vmul.f32 %v331, %v329
    %v334 = vadd.f32 %v316, %v332
    %v335 = vadd.f32 %v317, %v333
    %s336 = sld [smem:[#allocation9 + $0xd]]
    %v337 = vstv %s336
    %v338 = vmul.f32 %v337, %v100
    %v339 = vmul.f32 %v337, %v101
    %340 = vset.pattern.permute.xlu0 13
    %341 = vperm.xlu0 %340, %v86
    %v342 = vpop.permute.xlu0 %341
    %v344 = vadd.f32 %v338, %v342
    %v345 = vadd.f32 %v339, %v342
    %v346 = vmax.f32 %v344, 0.0
    %v347 = vmax.f32 %v345, 0.0
    %s348 = sld [smem:[#allocation10 + $0xd]]
    %v349 = vstv %s348
    %v350 = vmul.f32 %v349, %v346
    %v351 = vmul.f32 %v349, %v347
    %v352 = vadd.f32 %v334, %v350
    %v353 = vadd.f32 %v335, %v351
    %s354 = sld [smem:[#allocation9 + $0xe]]
    %v355 = vstv %s354
    %v356 = vmul.f32 %v355, %v100
    %v357 = vmul.f32 %v355, %v101
    %358 = vset.pattern.permute.xlu0 14
    %359 = vperm.xlu0 %358, %v86
    %v360 = vpop.permute.xlu0 %359
    %v362 = vadd.f32 %v356, %v360
    %v363 = vadd.f32 %v357, %v360
    %v364 = vmax.f32 %v362, 0.0
    %v365 = vmax.f32 %v363, 0.0
    %s366 = sld [smem:[#allocation10 + $0xe]]
    %v367 = vstv %s366
    %v368 = vmul.f32 %v367, %v364
    %v369 = vmul.f32 %v367, %v365
    %v370 = vadd.f32 %v352, %v368
    %v371 = vadd.f32 %v353, %v369
    %s372 = sld [smem:[#allocation9 + $0xf]]
    %v373 = vstv %s372
    %v374 = vmul.f32 %v373, %v100
    %v375 = vmul.f32 %v373, %v101
    %376 = vset.pattern.permute.xlu0 15
    %377 = vperm.xlu0 %376, %v86
    %v378 = vpop.permute.xlu0 %377
    %v380 = vadd.f32 %v374, %v378
    %v381 = vadd.f32 %v375, %v378
    %v382 = vmax.f32 %v380, 0.0
    %v383 = vmax.f32 %v381, 0.0
    %s384 = sld [smem:[#allocation10 + $0xf]]
    %v385 = vstv %s384
    %v386 = vmul.f32 %v385, %v382
    %v387 = vmul.f32 %v385, %v383
    %v388 = vadd.f32 %v370, %v386
    %v389 = vadd.f32 %v371, %v387
    %s390 = sld [smem:[#allocation9 + $0x10]]
    %v391 = vstv %s390
    %v392 = vmul.f32 %v391, %v100
    %v393 = vmul.f32 %v391, %v101
    %394 = vset.pattern.permute.xlu0 16
    %395 = vperm.xlu0 %394, %v86
    %v396 = vpop.permute.xlu0 %395
    %v398 = vadd.f32 %v392, %v396
    %v399 = vadd.f32 %v393, %v396
    %v400 = vmax.f32 %v398, 0.0
    %v401 = vmax.f32 %v399, 0.0
    %s402 = sld [smem:[#allocation10 + $0x10]]
    %v403 = vstv %s402
    %v404 = vmul.f32 %v403, %v400
    %v405 = vmul.f32 %v403, %v401
    %v406 = vadd.f32 %v388, %v404
    %v407 = vadd.f32 %v389, %v405
    %s408 = sld [smem:[#allocation9 + $0x11]]
    %v409 = vstv %s408
    %v410 = vmul.f32 %v409, %v100
    %v411 = vmul.f32 %v409, %v101
    %412 = vset.pattern.permute.xlu0 17
    %413 = vperm.xlu0 %412, %v86
    %v414 = vpop.permute.xlu0 %413
    %v416 = vadd.f32 %v410, %v414
    %v417 = vadd.f32 %v411, %v414
    %v418 = vmax.f32 %v416, 0.0
    %v419 = vmax.f32 %v417, 0.0
    %s420 = sld [smem:[#allocation10 + $0x11]]
    %v421 = vstv %s420
    %v422 = vmul.f32 %v421, %v418
    %v423 = vmul.f32 %v421, %v419
    %v424 = vadd.f32 %v406, %v422
    %v425 = vadd.f32 %v407, %v423
    %s426 = sld [smem:[#allocation9 + $0x12]]
    %v427 = vstv %s426
    %v428 = vmul.f32 %v427, %v100
    %v429 = vmul.f32 %v427, %v101
    %430 = vset.pattern.permute.xlu0 18
    %431 = vperm.xlu0 %430, %v86
    %v432 = vpop.permute.xlu0 %431
    %v434 = vadd.f32 %v428, %v432
    %v435 = vadd.f32 %v429, %v432
    %v436 = vmax.f32 %v434, 0.0
    %v437 = vmax.f32 %v435, 0.0
    %s438 = sld [smem:[#allocation10 + $0x12]]
    %v439 = vstv %s438
    %v440 = vmul.f32 %v439, %v436
    %v441 = vmul.f32 %v439, %v437
    %v442 = vadd.f32 %v424, %v440
    %v443 = vadd.f32 %v425, %v441
    %s444 = sld [smem:[#allocation9 + $0x13]]
    %v445 = vstv %s444
    %v446 = vmul.f32 %v445, %v100
    %v447 = vmul.f32 %v445, %v101
    %448 = vset.pattern.permute.xlu0 19
    %449 = vperm.xlu0 %448, %v86
    %v450 = vpop.permute.xlu0 %449
    %v452 = vadd.f32 %v446, %v450
    %v453 = vadd.f32 %v447, %v450
    %v454 = vmax.f32 %v452, 0.0
    %v455 = vmax.f32 %v453, 0.0
    %s456 = sld [smem:[#allocation10 + $0x13]]
    %v457 = vstv %s456
    %v458 = vmul.f32 %v457, %v454
    %v459 = vmul.f32 %v457, %v455
    %v460 = vadd.f32 %v442, %v458
    %v461 = vadd.f32 %v443, %v459
    %s462 = sld [smem:[#allocation9 + $0x14]]
    %v463 = vstv %s462
    %v464 = vmul.f32 %v463, %v100
    %v465 = vmul.f32 %v463, %v101
    %466 = vset.pattern.permute.xlu0 20
    %467 = vperm.xlu0 %466, %v86
    %v468 = vpop.permute.xlu0 %467
    %v470 = vadd.f32 %v464, %v468
    %v471 = vadd.f32 %v465, %v468
    %v472 = vmax.f32 %v470, 0.0
    %v473 = vmax.f32 %v471, 0.0
    %s474 = sld [smem:[#allocation10 + $0x14]]
    %v475 = vstv %s474
    %v476 = vmul.f32 %v475, %v472
    %v477 = vmul.f32 %v475, %v473
    %v478 = vadd.f32 %v460, %v476
    %v479 = vadd.f32 %v461, %v477
    %s480 = sld [smem:[#allocation9 + $0x15]]
    %v481 = vstv %s480
    %v482 = vmul.f32 %v481, %v100
    %v483 = vmul.f32 %v481, %v101
    %484 = vset.pattern.permute.xlu0 21
    %485 = vperm.xlu0 %484, %v86
    %v486 = vpop.permute.xlu0 %485
    %v488 = vadd.f32 %v482, %v486
    %v489 = vadd.f32 %v483, %v486
    %v490 = vmax.f32 %v488, 0.0
    %v491 = vmax.f32 %v489, 0.0
    %s492 = sld [smem:[#allocation10 + $0x15]]
    %v493 = vstv %s492
    %v494 = vmul.f32 %v493, %v490
    %v495 = vmul.f32 %v493, %v491
    %v496 = vadd.f32 %v478, %v494
    %v497 = vadd.f32 %v479, %v495
    %s498 = sld [smem:[#allocation9 + $0x16]]
    %v499 = vstv %s498
    %v500 = vmul.f32 %v499, %v100
    %v501 = vmul.f32 %v499, %v101
    %502 = vset.pattern.permute.xlu0 22
    %503 = vperm.xlu0 %502, %v86
    %v504 = vpop.permute.xlu0 %503
    %v506 = vadd.f32 %v500, %v504
    %v507 = vadd.f32 %v501, %v504
    %v508 = vmax.f32 %v506, 0.0
    %v509 = vmax.f32 %v507, 0.0
    %s510 = sld [smem:[#allocation10 + $0x16]]
    %v511 = vstv %s510
    %v512 = vmul.f32 %v511, %v508
    %v513 = vmul.f32 %v511, %v509
    %v514 = vadd.f32 %v496, %v512
    %v515 = vadd.f32 %v497, %v513
    %s516 = sld [smem:[#allocation9 + $0x17]]
    %v517 = vstv %s516
    %v518 = vmul.f32 %v517, %v100
    %v519 = vmul.f32 %v517, %v101
    %520 = vset.pattern.permute.xlu0 23
    %521 = vperm.xlu0 %520, %v86
    %v522 = vpop.permute.xlu0 %521
    %v524 = vadd.f32 %v518, %v522
    %v525 = vadd.f32 %v519, %v522
    %v526 = vmax.f32 %v524, 0.0
    %v527 = vmax.f32 %v525, 0.0
    %s528 = sld [smem:[#allocation10 + $0x17]]
    %v529 = vstv %s528
    %v530 = vmul.f32 %v529, %v526
    %v531 = vmul.f32 %v529, %v527
    %v532 = vadd.f32 %v514, %v530
    %v533 = vadd.f32 %v515, %v531
    %s534 = sld [smem:[#allocation9 + $0x18]]
    %v535 = vstv %s534
    %v536 = vmul.f32 %v535, %v100
    %v537 = vmul.f32 %v535, %v101
    %538 = vset.pattern.permute.xlu0 24
    %539 = vperm.xlu0 %538, %v86
    %v540 = vpop.permute.xlu0 %539
    %v542 = vadd.f32 %v536, %v540
    %v543 = vadd.f32 %v537, %v540
    %v544 = vmax.f32 %v542, 0.0
    %v545 = vmax.f32 %v543, 0.0
    %s546 = sld [smem:[#allocation10 + $0x18]]
    %v547 = vstv %s546
    %v548 = vmul.f32 %v547, %v544
    %v549 = vmul.f32 %v547, %v545
    %v550 = vadd.f32 %v532, %v548
    %v551 = vadd.f32 %v533, %v549
    %s552 = sld [smem:[#allocation9 + $0x19]]
    %v553 = vstv %s552
    %v554 = vmul.f32 %v553, %v100
    %v555 = vmul.f32 %v553, %v101
    %556 = vset.pattern.permute.xlu0 25
    %557 = vperm.xlu0 %556, %v86
    %v558 = vpop.permute.xlu0 %557
    %v560 = vadd.f32 %v554, %v558
    %v561 = vadd.f32 %v555, %v558
    %v562 = vmax.f32 %v560, 0.0
    %v563 = vmax.f32 %v561, 0.0
    %s564 = sld [smem:[#allocation10 + $0x19]]
    %v565 = vstv %s564
    %v566 = vmul.f32 %v565, %v562
    %v567 = vmul.f32 %v565, %v563
    %v568 = vadd.f32 %v550, %v566
    %v569 = vadd.f32 %v551, %v567
    %s570 = sld [smem:[#allocation9 + $0x1a]]
    %v571 = vstv %s570
    %v572 = vmul.f32 %v571, %v100
    %v573 = vmul.f32 %v571, %v101
    %574 = vset.pattern.permute.xlu0 26
    %575 = vperm.xlu0 %574, %v86
    %v576 = vpop.permute.xlu0 %575
    %v578 = vadd.f32 %v572, %v576
    %v579 = vadd.f32 %v573, %v576
    %v580 = vmax.f32 %v578, 0.0
    %v581 = vmax.f32 %v579, 0.0
    %s582 = sld [smem:[#allocation10 + $0x1a]]
    %v583 = vstv %s582
    %v584 = vmul.f32 %v583, %v580
    %v585 = vmul.f32 %v583, %v581
    %v586 = vadd.f32 %v568, %v584
    %v587 = vadd.f32 %v569, %v585
    %s588 = sld [smem:[#allocation9 + $0x1b]]
    %v589 = vstv %s588
    %v590 = vmul.f32 %v589, %v100
    %v591 = vmul.f32 %v589, %v101
    %592 = vset.pattern.permute.xlu0 27
    %593 = vperm.xlu0 %592, %v86
    %v594 = vpop.permute.xlu0 %593
    %v596 = vadd.f32 %v590, %v594
    %v597 = vadd.f32 %v591, %v594
    %v598 = vmax.f32 %v596, 0.0
    %v599 = vmax.f32 %v597, 0.0
    %s600 = sld [smem:[#allocation10 + $0x1b]]
    %v601 = vstv %s600
    %v602 = vmul.f32 %v601, %v598
    %v603 = vmul.f32 %v601, %v599
    %v604 = vadd.f32 %v586, %v602
    %v605 = vadd.f32 %v587, %v603
    %s606 = sld [smem:[#allocation9 + $0x1c]]
    %v607 = vstv %s606
    %v608 = vmul.f32 %v607, %v100
    %v609 = vmul.f32 %v607, %v101
    %610 = vset.pattern.permute.xlu0 28
    %611 = vperm.xlu0 %610, %v86
    %v612 = vpop.permute.xlu0 %611
    %v614 = vadd.f32 %v608, %v612
    %v615 = vadd.f32 %v609, %v612
    %v616 = vmax.f32 %v614, 0.0
    %v617 = vmax.f32 %v615, 0.0
    %s618 = sld [smem:[#allocation10 + $0x1c]]
    %v619 = vstv %s618
    %v620 = vmul.f32 %v619, %v616
    %v621 = vmul.f32 %v619, %v617
    %v622 = vadd.f32 %v604, %v620
    %v623 = vadd.f32 %v605, %v621
    %s624 = sld [smem:[#allocation9 + $0x1d]]
    %v625 = vstv %s624
    %v626 = vmul.f32 %v625, %v100
    %v627 = vmul.f32 %v625, %v101
    %628 = vset.pattern.permute.xlu0 29
    %629 = vperm.xlu0 %628, %v86
    %v630 = vpop.permute.xlu0 %629
    %v632 = vadd.f32 %v626, %v630
    %v633 = vadd.f32 %v627, %v630
    %v634 = vmax.f32 %v632, 0.0
    %v635 = vmax.f32 %v633, 0.0
    %s636 = sld [smem:[#allocation10 + $0x1d]]
    %v637 = vstv %s636
    %v638 = vmul.f32 %v637, %v634
    %v639 = vmul.f32 %v637, %v635
    %v640 = vadd.f32 %v622, %v638
    %v641 = vadd.f32 %v623, %v639
    %s642 = sld [smem:[#allocation9 + $0x1e]]
    %v643 = vstv %s642
    %v644 = vmul.f32 %v643, %v100
    %v645 = vmul.f32 %v643, %v101
    %646 = vset.pattern.permute.xlu0 30
    %647 = vperm.xlu0 %646, %v86
    %v648 = vpop.permute.xlu0 %647
    %v650 = vadd.f32 %v644, %v648
    %v651 = vadd.f32 %v645, %v648
    %v652 = vmax.f32 %v650, 0.0
    %v653 = vmax.f32 %v651, 0.0
    %s654 = sld [smem:[#allocation10 + $0x1e]]
    %v655 = vstv %s654
    %v656 = vmul.f32 %v655, %v652
    %v657 = vmul.f32 %v655, %v653
    %v658 = vadd.f32 %v640, %v656
    %v659 = vadd.f32 %v641, %v657
    %s660 = sld [smem:[#allocation9 + $0x1f]]
    %v661 = vstv %s660
    %v662 = vmul.f32 %v661, %v100
    %v663 = vmul.f32 %v661, %v101
    %664 = vset.pattern.permute.xlu0 31
    %665 = vperm.xlu0 %664, %v86
    %v666 = vpop.permute.xlu0 %665
    %v668 = vadd.f32 %v662, %v666
    %v669 = vadd.f32 %v663, %v666
    %v670 = vmax.f32 %v668, 0.0
    %v671 = vmax.f32 %v669, 0.0
    %s672 = sld [smem:[#allocation10 + $0x1f]]
    %v673 = vstv %s672
    %v674 = vmul.f32 %v673, %v670
    %v675 = vmul.f32 %v673, %v671
    %v676 = vadd.f32 %v658, %v674
    %v677 = vadd.f32 %v659, %v675
    %v678 = vstv %s76
    %v679 = vadd.f32 %v676, %v678
    %v680 = vadd.f32 %v677, %v678
    %s681 = smul.addr %s77, 8
    %s682 = scalar_lea.vmem [#allocation12], %s681
    %683 = vst [vmem:[%s682] sm:$0xff] %v679
    %684 = vst [vmem:[%s682 + $0x8] sm:$0xff] %v680
    %v685 = vsub.f32 %v679, %v84
    %v686 = vsub.f32 %v680, %v85
    %v687 = vmul.f32 %v685, %v685
    %v688 = vmul.f32 %v686, %v686
    %v689 = vadd.f32 %v687, %v688
    %690 = vadd.xlane.f32.xlu0 %v689
    %v691 = vpop.xlane.xlu0 %690
    %vm692 = vcmask 7168
    %693 = vst.msk [vmem:[%s7] sm:$0xff] %vm692, %v691
    // Predicated region
    $region42: #{tpu_custom_call.1} parent=1 // pred_check
      _
    $region43: #{tpu_custom_call.1} parent=1 // pred_check_branch
      %695 = sbr.rel (0) target = $region45
    $region44: #{tpu_custom_call.1} parent=1 // pred_region
      %s697 = ssub.s32 256, 256
      %698 = vsyncadd [#allocation5], %s697
      %s700 = sshll.u32 [#allocation12], 4
      %s701 = int_to_ptr.vmem [resolvable:$true] %s700
      %703 = dma.vmem_to_hbm [thread:$0]  %s701, 256, %s6, [#allocation5]
    $region45: #{tpu_custom_call.1} parent=1 // pred_fallthru
      _
    // Predicated region
    $region46: #{tpu_custom_call.1} parent=1 // pred_check
      _
    $region47: #{tpu_custom_call.1} parent=1 // pred_check_branch
      %705 = sbr.rel (0) target = $region49
    $region48: #{tpu_custom_call.1} parent=1 // pred_region
      _
    $region49: #{tpu_custom_call.1} parent=1 // pred_fallthru
      _
    // Predicated region
    $region50: #{tpu_custom_call.1} parent=1 // pred_check
      _
    $region51: #{tpu_custom_call.1} parent=1 // pred_check_branch
      %707 = sbr.rel (0) target = $region53
    $region52: #{tpu_custom_call.1} parent=1 // pred_region
      %708 = dma.done [#allocation5], 256
    $region53: #{tpu_custom_call.1} parent=1 // pred_fallthru
      _
    // Predicated region
    $region54: #{tpu_custom_call.1} parent=1 // pred_check
      _
    $region55: #{tpu_custom_call.1} parent=1 // pred_check_branch
      %710 = sbr.rel (0) target = $region57
    $region56: #{tpu_custom_call.1} parent=1 // pred_region
      _
    $region57: #{tpu_custom_call.1} parent=1 // pred_fallthru
      _
    %711 = vsyncpa [#allocation4], 1
    %712 = vsyncpa [#allocation8], 1
    %713 = vsyncpa [#allocation5], 1
    %714 = vsyncpa [#allocation6], 1
    %715 = vsyncpa [#allocation11], 1

</llo_original>
